<compile_context>
chip_gen: v7x
topology: tpu7x:2x2x1
jax: 0.10.0
libtpu: 0.0.40
codegen_flags: <defaults>
</compile_context>

<pallas_src>
import jax
import jax.numpy as jnp
from jax import lax
from jax.experimental import pallas as pl
from jax.experimental.pallas import tpu as pltpu

BN_EPS = 1e-5
SUB = 8        # f32 sublane tile
LANE = 128     # lane tile


def _round_up(a, b):
    return (a + b - 1) // b * b


def _vmem_capacity_bytes():
    try:
        return int(pltpu.get_tpu_info().vmem_capacity_bytes)
    except Exception:
        return 64 * 1024 * 1024      # conservative default (v7x per-core VMEM)


def _tiling(R, C, itemsize, group, target_tile_bytes):
    bytes_per_row = C * LANE * itemsize
    rows_budget = max(group,
                      (target_tile_bytes // max(bytes_per_row, 1)) // group * group)
    TR = max(group, min(_round_up(R, group), rows_budget, 512))
    num_tiles = (R + TR - 1) // TR
    return TR, num_tiles, num_tiles * TR


def _conv_max_stats_tile(x_ref, w_ref, store_fn, row_base, valid_rows, group):
    """Stream one (C, TR, LANE) tile of x: 1x1-conv channel reduction, channel
    max, and masked BN partial sums.

    store_fn(abs_row_start, conv_f32, max_native) persists per-row-group results.
    Returns (sum_part, sq_part): (group, LANE) f32 BN partial statistics with
    tile rows >= valid_rows masked out (DMA-clamped stale rows never reach the
    statistics).  Partials are carried in the loop carry and flushed by the
    caller once per grid step.
    """
    C, TR, _ = x_ref.shape
    n_groups = TR // group
    c_unroll = True if C <= 32 else 8
    zero = jnp.zeros((group, LANE), jnp.float32)
    ninf = jnp.full((group, LANE), -jnp.inf, x_ref.dtype)
    row_iota = lax.broadcasted_iota(jnp.int32, (group, LANE), 0)

    def rg_body(rg, carry):
        sum_part, sq_part = carry
        r0 = pl.multiple_of(rg * group, group)

        def c_body(c, ac):
            acc_s, acc_m = ac
            blk = x_ref[c, pl.ds(r0, group), :]              # native-dtype vreg(s)
            acc_s = acc_s + blk.astype(jnp.float32) * w_ref[c]
            acc_m = jnp.maximum(acc_m, blk)                   # exact in native dtype
            return acc_s, acc_m

        acc_s, acc_m = lax.fori_loop(0, C, c_body, (zero, ninf), unroll=c_unroll)
        store_fn(pl.multiple_of(row_base + rg * group, group), acc_s, acc_m)
        masked = jnp.where(row_iota + rg * group < valid_rows, acc_s, 0.0)
        return sum_part + masked, sq_part + masked * masked

    return lax.fori_loop(0, n_groups, rg_body, (zero, zero),
                         unroll=True if n_groups <= 8 else False)


def _apply_kernel(scale_ref, shift_ref, y_ref, m_ref, o_ref):
    """Two-phase fallback, phase 2: out = scale*conv + shift + channel_max."""
    o_ref[...] = (y_ref[...].astype(jnp.float32) * scale_ref[0] + shift_ref[0]
                  + m_ref[...].astype(jnp.float32)).astype(o_ref.dtype)


def spatial_encoder(x_nchw, conv_w, gamma, beta, *,
                    target_tile_bytes=None, force_two_phase=False):
    """SpatialEncoder forward.  x: (N, C, H, W); conv_w: (1, C, 1, 1);
    gamma/beta: (1,) BatchNorm2d affine params.  Returns (N, 1, H, W)."""
    N, C, H, W = x_nchw.shape
    in_dtype = x_nchw.dtype
    itemsize = jnp.dtype(in_dtype).itemsize
    HW = H * W

    vmem_cap = _vmem_capacity_bytes()
    if target_tile_bytes is None:
        # 4 MiB tiles on 64 MiB-VMEM chips (v7x), 8 MiB on 128 MiB chips (v5e/v6e).
        target_tile_bytes = (4 if vmem_cap <= 64 * 2**20 else 8) * 2**20

    # Full-vreg row groups: 8 rows for 4-byte dtypes, 16 for bf16/f16.
    GROUP = max(SUB, (4 // itemsize) * SUB)

    # Spatial axis laid out as (rows, 128 lanes).  At most a lane-multiple zero
    # pad (<= 127 elements per (n, c) row) -- never a tile-multiple pad of x.
    HW_pad = _round_up(HW, LANE)
    R = HW_pad // LANE

    TR, num_tiles, R_grid = _tiling(R, C, itemsize, GROUP, target_tile_bytes)

    # VMEM residency decision for the fused single-launch kernel.
    x_tile = C * TR * LANE * itemsize
    out_tile = TR * LANE * itemsize
    resident = N * R_grid * LANE * (4 + itemsize)     # conv (f32) + max (in_dtype)
    fused_need = resident + 2 * (x_tile + out_tile) + 2 * GROUP * LANE * 4 + (2 << 20)
    use_fused = (not force_two_phase) and fused_need <= int(0.70 * vmem_cap)
    vmem_limit = int(min(0.85 * vmem_cap, 100 * 2**20))

    if not use_fused and GROUP < 16:
        # Fallback stores the conv intermediate as bf16: keep row groups (and
        # hence block row counts) multiples of the 16-row bf16 sublane tile.
        GROUP = 16
        TR, num_tiles, R_grid = _tiling(R, C, itemsize, GROUP, target_tile_bytes)

    x = x_nchw.reshape(N, C, HW)
    if HW_pad != HW:
        x = jnp.pad(x, ((0, 0), (0, 0), (0, HW_pad - HW)))
    x = x.reshape(N, C, R, LANE)

    w = conv_w.reshape(C).astype(jnp.float32)
    inv_count = 1.0 / float(N * HW)       # padded lanes contribute exactly 0 to sums
    smem = pl.BlockSpec(memory_space=pltpu.MemorySpace.SMEM)

    if use_fused:
        gb = jnp.concatenate([gamma.reshape(1), beta.reshape(1)]).astype(jnp.float32)

        def fused_kernel(w_ref, gb_ref, x_ref, o_ref, y_sc, m_sc, sum_sc, sq_sc):
            p = pl.program_id(0)
            n = pl.program_id(1)
            i = pl.program_id(2)

            @pl.when((p == 0) & (n == 0) & (i == 0))
            def _init():
                sum_sc[...] = jnp.zeros_like(sum_sc)
                sq_sc[...] = jnp.zeros_like(sq_sc)

            @pl.when(p == 0)
            def _encode():
                def store(r0, conv_f32, max_native):
                    y_sc[pl.ds(r0, GROUP), :] = conv_f32
                    m_sc[pl.ds(r0, GROUP), :] = max_native

                s_part, q_part = _conv_max_stats_tile(
                    x_ref, w_ref, store,
                    n * R_grid + i * TR,                 # absolute row base in scratch
                    jnp.minimum(R - i * TR, TR),         # valid rows in this tile
                    GROUP)
                # Flush the per-step partials once (no per-row-group VMEM RMW).
                sum_sc[...] += s_part
                sq_sc[...] += q_part

            @pl.when(p == 1)
            def _apply():
                # BN batch statistics: lane + sublane reduce of the vreg-shaped
                # accumulators, EUP rsqrt on a (1,1) tile (cheap per step).
                def total(ref):
                    return jnp.sum(jnp.sum(ref[...], axis=1, keepdims=True),
                                   axis=0, keepdims=True)          # (1, 1)
                mean = total(sum_sc) * inv_count
                var = jnp.maximum(total(sq_sc) * inv_count - mean * mean, 0.0)
                scale = gb_ref[0] * lax.rsqrt(var + BN_EPS)         # (1, 1)
                shift = gb_ref[1] - mean * scale                    # (1, 1)
                r0 = pl.multiple_of(n * R_grid + i * TR, GROUP)
                y = y_sc[pl.ds(r0, TR), :]
                mx = m_sc[pl.ds(r0, TR), :].astype(jnp.float32)
                o_ref[...] = (y * scale + shift + mx).astype(o_ref.dtype)

        out_padded = pl.pallas_call(
            fused_kernel,
            grid=(2, N, num_tiles),
            in_specs=[
                smem,                                               # conv weights (C,)
                smem,                                               # gamma/beta (2,)
                pl.BlockSpec(
                    (None, C, TR, LANE),
                    # Phase 1 pins the x window to the last phase-0 block so no
                    # tile is re-fetched during the apply pass.
                    lambda p, n, i: (n * (1 - p) + (N - 1) * p, 0,
                                     i * (1 - p) + (num_tiles - 1) * p, 0)),
            ],
            out_specs=pl.BlockSpec((None, TR, LANE),
                                   lambda p, n, i: (n * p, i * p, 0)),
            out_shape=jax.ShapeDtypeStruct((N, R_grid, LANE), in_dtype),
            scratch_shapes=[
                pltpu.VMEM((N * R_grid, LANE), jnp.float32),   # conv output, resident
                pltpu.VMEM((N * R_grid, LANE), in_dtype),      # channel max, resident
                pltpu.VMEM((GROUP, LANE), jnp.float32),        # BN sum partials
                pltpu.VMEM((GROUP, LANE), jnp.float32),        # BN sum-of-squares
            ],
            compiler_params=pltpu.CompilerParams(
                dimension_semantics=("arbitrary", "arbitrary", "arbitrary"),
                vmem_limit_bytes=vmem_limit),
        )(w, gb, x)

    else:
        # ---- Two-phase HBM fallback (huge spatial maps only). ----
        def encode_kernel(w_ref, x_ref, y_ref, m_ref, ps_ref, pq_ref):
            i = pl.program_id(1)

            def store(r0, conv_f32, max_native):
                y_ref[pl.ds(r0, GROUP), :] = conv_f32.astype(y_ref.dtype)
                m_ref[pl.ds(r0, GROUP), :] = max_native

            s_part, q_part = _conv_max_stats_tile(
                x_ref, w_ref, store, 0, jnp.minimum(R - i * TR, TR), GROUP)
            # Per-tile stat partials -> no cross-step state -> fully parallel grid.
            ps_ref[...] = s_part
            pq_ref[...] = q_part

        y_i, mx, ps, pq = pl.pallas_call(
            encode_kernel,
            grid=(N, num_tiles),
            in_specs=[smem,
                      pl.BlockSpec((None, C, TR, LANE), lambda n, i: (n, 0, i, 0))],
            out_specs=(
                pl.BlockSpec((None, TR, LANE), lambda n, i: (n, i, 0)),
                pl.BlockSpec((None, TR, LANE), lambda n, i: (n, i, 0)),
                pl.BlockSpec((None, GROUP, LANE),
                             lambda n, i: (n * num_tiles + i, 0, 0)),
                pl.BlockSpec((None, GROUP, LANE),
                             lambda n, i: (n * num_tiles + i, 0, 0)),
            ),
            out_shape=(
                jax.ShapeDtypeStruct((N, R_grid, LANE), jnp.bfloat16),  # narrow conv
                jax.ShapeDtypeStruct((N, R_grid, LANE), in_dtype),      # exact max
                jax.ShapeDtypeStruct((N * num_tiles, GROUP, LANE), jnp.float32),
                jax.ShapeDtypeStruct((N * num_tiles, GROUP, LANE), jnp.float32),
            ),
            compiler_params=pltpu.CompilerParams(
                dimension_semantics=("parallel", "parallel"),
                vmem_limit_bytes=vmem_limit),
        )(w, x)

        count = jnp.float32(N * HW)
        mean = jnp.sum(ps) / count
        var = jnp.maximum(jnp.sum(pq) / count - mean * mean, 0.0)
        inv_std = lax.rsqrt(var + BN_EPS)
        g = gamma.astype(jnp.float32)[0]
        b = beta.astype(jnp.float32)[0]
        scale = (g * inv_std).reshape(1)
        shift = (b - g * mean * inv_std).reshape(1)

        out_padded = pl.pallas_call(
            _apply_kernel,
            grid=(N, num_tiles),
            in_specs=[smem, smem,
                      pl.BlockSpec((None, TR, LANE), lambda n, i: (n, i, 0)),
                      pl.BlockSpec((None, TR, LANE), lambda n, i: (n, i, 0))],
            out_specs=pl.BlockSpec((None, TR, LANE), lambda n, i: (n, i, 0)),
            out_shape=jax.ShapeDtypeStruct((N, R_grid, LANE), in_dtype),
            # Output reuses the channel-max buffer (same shape/dtype): no third
            # N*HW-sized allocation.
            # TODO(synk): pipeline_mode=pl.Buffered(3) on y/mx if exposed DMA
            # shows up at very small TR (large-C configs).
            input_output_aliases={3: 0},
            compiler_params=pltpu.CompilerParams(
                dimension_semantics=("parallel", "parallel"),
                vmem_limit_bytes=vmem_limit),
        )(scale, shift, y_i, mx)

    return out_padded.reshape(N, R_grid * LANE)[:, :HW].reshape(N, 1, H, W)


def spatial_encoder_ref(x_nchw, conv_w, gamma, beta):
    """Pure-JAX reference (same math as the PyTorch forward, training-mode BN)."""
    N, C, H, W = x_nchw.shape
    xf = x_nchw.astype(jnp.float32)
    w = conv_w.reshape(1, C, 1, 1).astype(jnp.float32)
    y = jnp.sum(xf * w, axis=1, keepdims=True)                  # (N, 1, H, W)
    mean = jnp.mean(y)
    var = jnp.mean((y - mean) ** 2)                             # biased
    bn = gamma[0] * (y - mean) * lax.rsqrt(var + BN_EPS) + beta[0]
    out2 = jnp.max(xf, axis=1, keepdims=True)
    return (bn + out2).astype(x_nchw.dtype)


if __name__ == "__main__":
    # TODO(synk): PyTorch's `out += out2` only broadcasts legally for batch
    # size 1, so all examples use N=1 (the kernel itself handles general N with
    # a keepdim add, identical to PyTorch for N==1).
    key = jax.random.PRNGKey(0)
    run = jax.jit(spatial_encoder,
                  static_argnames=("target_tile_bytes", "force_two_phase"))

    cases = [
        # name, (N, C, H, W, dtype), extra kwargs, atol, rtol
        ("f32 fused",            (1, 8, 16, 16, jnp.float32), {}, 1e-3, 1e-3),
        ("f32 fused multi-tile", (1, 4, 64, 64, jnp.float32),
         {"target_tile_bytes": 16 * 1024}, 1e-3, 1e-3),
        ("bf16 fused lane-pad",  (1, 16, 20, 25, jnp.bfloat16), {}, 5e-2, 5e-2),
        ("bf16 two-phase",       (1, 8, 16, 16, jnp.bfloat16),
         {"force_two_phase": True}, 5e-2, 5e-2),
    ]

    for ck, (name, (N, C, H, W, dtype), kwargs, atol, rtol) in zip(
            jax.random.split(key, len(cases)), cases):
        kx, kw = jax.random.split(ck)
        x = jax.random.normal(kx, (N, C, H, W), dtype=jnp.float32).astype(dtype)
        conv_w = jax.random.normal(kw, (1, C, 1, 1), dtype=jnp.float32) / jnp.sqrt(C)
        gamma = jnp.array([1.3], dtype=jnp.float32)
        beta = jnp.array([-0.25], dtype=jnp.float32)

        out = jax.block_until_ready(run(x, conv_w, gamma, beta, **kwargs))
        ref = spatial_encoder_ref(x, conv_w, gamma, beta)

        assert out.shape == (N, 1, H, W), f"{name}: bad shape {out.shape}"
        o32 = out.astype(jnp.float32)
        r32 = ref.astype(jnp.float32)
        err = float(jnp.max(jnp.abs(o32 - r32)))
        assert jnp.allclose(o32, r32, atol=atol, rtol=rtol), (
            f"{name}: mismatch vs reference, max abs diff = {err}")

    print("KERNEL_OK")
</pallas_src>

<mosaic_0001>
module attributes {stable_mosaic.version = 11 : i64} {
  func.func @fused_kernel(%arg0: i32, %arg1: i32, %arg2: i32, %arg3: memref<8xf32, #tpu.memory_space<smem>>, %arg4: memref<2xf32, #tpu.memory_space<smem>>, %arg5: memref<1x8x8x128xf32, #tpu.memory_space<vmem>>, %arg6: memref<1x8x128xf32, #tpu.memory_space<vmem>>, %arg7: memref<8x128xf32, #tpu.memory_space<vmem>>, %arg8: memref<8x128xf32, #tpu.memory_space<vmem>>, %arg9: memref<8x128xf32, #tpu.memory_space<vmem>>, %arg10: memref<8x128xf32, #tpu.memory_space<vmem>>) attributes {dimension_semantics = [#tpu.dimension_semantics<arbitrary>, #tpu.dimension_semantics<arbitrary>, #tpu.dimension_semantics<arbitrary>], iteration_bounds = array<i64: 2, 1, 1>, scalar_prefetch = 0 : i64, scratch_operands = 4 : i64, tpu.core_type = #tpu.core_type<tc>, window_params = [{transform_indices = @transform_0, window_bounds = array<i64: 8>}, {transform_indices = @transform_1, window_bounds = array<i64: 2>}, {transform_indices = @transform_2, window_bounds = array<i64: 1, 8, 8, 128>}, {transform_indices = @transform_3, window_bounds = array<i64: 1, 8, 128>}]} {
    %c0_i32 = arith.constant 0 : i32
    %0 = arith.cmpi eq, %arg0, %c0_i32 : i32
    %c0_i32_0 = arith.constant 0 : i32
    %1 = arith.cmpi eq, %arg1, %c0_i32_0 : i32
    %2 = arith.andi %0, %1 : i1
    %c0_i32_1 = arith.constant 0 : i32
    %3 = arith.cmpi eq, %arg2, %c0_i32_1 : i32
    %4 = arith.andi %2, %3 : i1
    %5 = arith.extui %4 : i1 to i32
    %c0_i32_2 = arith.constant 0 : i32
    %6 = arith.cmpi ne, %5, %c0_i32_2 : i32
    scf.if %6 {
      %cst = arith.constant 0.000000e+00 : f32
      %13 = vector.broadcast %cst : f32 to vector<8x128xf32>
      %c0 = arith.constant 0 : index
      %c0_6 = arith.constant 0 : index
      %14 = vector.load %arg9[%c0, %c0_6] : memref<8x128xf32, #tpu.memory_space<vmem>>, vector<8x128xf32>
      tpu.vector_store %arg9[%c0, %c0_6], %13 {strides = array<i32>} : memref<8x128xf32, #tpu.memory_space<vmem>>, vector<8x128xf32>,
      %cst_7 = arith.constant 0.000000e+00 : f32
      %15 = vector.broadcast %cst_7 : f32 to vector<8x128xf32>
      %c0_8 = arith.constant 0 : index
      %c0_9 = arith.constant 0 : index
      %16 = vector.load %arg10[%c0_8, %c0_9] : memref<8x128xf32, #tpu.memory_space<vmem>>, vector<8x128xf32>
      tpu.vector_store %arg10[%c0_8, %c0_9], %15 {strides = array<i32>} : memref<8x128xf32, #tpu.memory_space<vmem>>, vector<8x128xf32>,
    } else {
    }
    %c0_i32_3 = arith.constant 0 : i32
    %7 = arith.cmpi eq, %arg0, %c0_i32_3 : i32
    %8 = arith.extui %7 : i1 to i32
    %c0_i32_4 = arith.constant 0 : i32
    %9 = arith.cmpi ne, %8, %c0_i32_4 : i32
    scf.if %9 {
      %c8_i32 = arith.constant 8 : i32
      %13 = arith.muli %arg1, %c8_i32 : i32
      %c8_i32_6 = arith.constant 8 : i32
      %14 = arith.muli %arg2, %c8_i32_6 : i32
      %15 = arith.addi %13, %14 : i32
      %c8_i32_7 = arith.constant 8 : i32
      %16 = arith.muli %arg2, %c8_i32_7 : i32
      %c2_i32 = arith.constant 2 : i32
      %17 = arith.subi %c2_i32, %16 : i32
      %c8_i32_8 = arith.constant 8 : i32
      %18 = arith.minsi %17, %c8_i32_8 : i32
      %cst = arith.constant 0.000000e+00 : f32
      %19 = vector.broadcast %cst : f32 to vector<8x128xf32>
      %cst_9 = arith.constant 0xFF800000 : f32
      %20 = vector.broadcast %cst_9 : f32 to vector<8x128xf32>
      %21 = tpu.iota {dimensions = array<i32: 0>} : vector<8x128xi32>
      %c0_i32_10 = arith.constant 0 : i32
      %c8_i32_11 = arith.constant 8 : i32
      %22 = arith.muli %c0_i32_10, %c8_i32_11 : i32
      %23 = tpu.assume_multiple %22, 8 : i32
      %c0_i32_12 = arith.constant 0 : i32
      %c0 = arith.constant 0 : index
      %24 = arith.index_cast %c0_i32_12 : i32 to index
      %25 = arith.index_cast %23 : i32 to index
      %c0_13 = arith.constant 0 : index
      %26 = vector.load %arg5[%c0, %24, %25, %c0_13] : memref<1x8x8x128xf32, #tpu.memory_space<vmem>>, vector<1x1x8x128xf32>
      %27 = vector.shape_cast %26 : vector<1x1x8x128xf32> to vector<8x128xf32>
      %28 = arith.index_cast %c0_i32_12 : i32 to index
      %29 = memref.load %arg3[%28] : memref<8xf32, #tpu.memory_space<smem>>
      %30 = vector.broadcast %29 : f32 to vector<8x128xf32>
      %31 = arith.mulf %27, %30 : vector<8x128xf32>
      %32 = arith.addf %19, %31 : vector<8x128xf32>
      %33 = arith.maximumf %20, %27 : vector<8x128xf32>
      %c1_i32_14 = arith.constant 1 : i32
      %c0_15 = arith.constant 0 : index
      %34 = arith.index_cast %c1_i32_14 : i32 to index
      %35 = arith.index_cast %23 : i32 to index
      %c0_16 = arith.constant 0 : index
      %36 = vector.load %arg5[%c0_15, %34, %35, %c0_16] : memref<1x8x8x128xf32, #tpu.memory_space<vmem>>, vector<1x1x8x128xf32>
      %37 = vector.shape_cast %36 : vector<1x1x8x128xf32> to vector<8x128xf32>
      %38 = arith.index_cast %c1_i32_14 : i32 to index
      %39 = memref.load %arg3[%38] : memref<8xf32, #tpu.memory_space<smem>>
      %40 = vector.broadcast %39 : f32 to vector<8x128xf32>
      %41 = arith.mulf %37, %40 : vector<8x128xf32>
      %42 = arith.addf %32, %41 : vector<8x128xf32>
      %43 = arith.maximumf %33, %37 : vector<8x128xf32>
      %c2_i32_17 = arith.constant 2 : i32
      %c0_18 = arith.constant 0 : index
      %44 = arith.index_cast %c2_i32_17 : i32 to index
      %45 = arith.index_cast %23 : i32 to index
      %c0_19 = arith.constant 0 : index
      %46 = vector.load %arg5[%c0_18, %44, %45, %c0_19] : memref<1x8x8x128xf32, #tpu.memory_space<vmem>>, vector<1x1x8x128xf32>
      %47 = vector.shape_cast %46 : vector<1x1x8x128xf32> to vector<8x128xf32>
      %48 = arith.index_cast %c2_i32_17 : i32 to index
      %49 = memref.load %arg3[%48] : memref<8xf32, #tpu.memory_space<smem>>
      %50 = vector.broadcast %49 : f32 to vector<8x128xf32>
      %51 = arith.mulf %47, %50 : vector<8x128xf32>
      %52 = arith.addf %42, %51 : vector<8x128xf32>
      %53 = arith.maximumf %43, %47 : vector<8x128xf32>
      %c3_i32 = arith.constant 3 : i32
      %c0_20 = arith.constant 0 : index
      %54 = arith.index_cast %c3_i32 : i32 to index
      %55 = arith.index_cast %23 : i32 to index
      %c0_21 = arith.constant 0 : index
      %56 = vector.load %arg5[%c0_20, %54, %55, %c0_21] : memref<1x8x8x128xf32, #tpu.memory_space<vmem>>, vector<1x1x8x128xf32>
      %57 = vector.shape_cast %56 : vector<1x1x8x128xf32> to vector<8x128xf32>
      %58 = arith.index_cast %c3_i32 : i32 to index
      %59 = memref.load %arg3[%58] : memref<8xf32, #tpu.memory_space<smem>>
      %60 = vector.broadcast %59 : f32 to vector<8x128xf32>
      %61 = arith.mulf %57, %60 : vector<8x128xf32>
      %62 = arith.addf %52, %61 : vector<8x128xf32>
      %63 = arith.maximumf %53, %57 : vector<8x128xf32>
      %c4_i32 = arith.constant 4 : i32
      %c0_22 = arith.constant 0 : index
      %64 = arith.index_cast %c4_i32 : i32 to index
      %65 = arith.index_cast %23 : i32 to index
      %c0_23 = arith.constant 0 : index
      %66 = vector.load %arg5[%c0_22, %64, %65, %c0_23] : memref<1x8x8x128xf32, #tpu.memory_space<vmem>>, vector<1x1x8x128xf32>
      %67 = vector.shape_cast %66 : vector<1x1x8x128xf32> to vector<8x128xf32>
      %68 = arith.index_cast %c4_i32 : i32 to index
      %69 = memref.load %arg3[%68] : memref<8xf32, #tpu.memory_space<smem>>
      %70 = vector.broadcast %69 : f32 to vector<8x128xf32>
      %71 = arith.mulf %67, %70 : vector<8x128xf32>
      %72 = arith.addf %62, %71 : vector<8x128xf32>
      %73 = arith.maximumf %63, %67 : vector<8x128xf32>
      %c5_i32 = arith.constant 5 : i32
      %c0_24 = arith.constant 0 : index
      %74 = arith.index_cast %c5_i32 : i32 to index
      %75 = arith.index_cast %23 : i32 to index
      %c0_25 = arith.constant 0 : index
      %76 = vector.load %arg5[%c0_24, %74, %75, %c0_25] : memref<1x8x8x128xf32, #tpu.memory_space<vmem>>, vector<1x1x8x128xf32>
      %77 = vector.shape_cast %76 : vector<1x1x8x128xf32> to vector<8x128xf32>
      %78 = arith.index_cast %c5_i32 : i32 to index
      %79 = memref.load %arg3[%78] : memref<8xf32, #tpu.memory_space<smem>>
      %80 = vector.broadcast %79 : f32 to vector<8x128xf32>
      %81 = arith.mulf %77, %80 : vector<8x128xf32>
      %82 = arith.addf %72, %81 : vector<8x128xf32>
      %83 = arith.maximumf %73, %77 : vector<8x128xf32>
      %c6_i32 = arith.constant 6 : i32
      %c0_26 = arith.constant 0 : index
      %84 = arith.index_cast %c6_i32 : i32 to index
      %85 = arith.index_cast %23 : i32 to index
      %c0_27 = arith.constant 0 : index
      %86 = vector.load %arg5[%c0_26, %84, %85, %c0_27] : memref<1x8x8x128xf32, #tpu.memory_space<vmem>>, vector<1x1x8x128xf32>
      %87 = vector.shape_cast %86 : vector<1x1x8x128xf32> to vector<8x128xf32>
      %88 = arith.index_cast %c6_i32 : i32 to index
      %89 = memref.load %arg3[%88] : memref<8xf32, #tpu.memory_space<smem>>
      %90 = vector.broadcast %89 : f32 to vector<8x128xf32>
      %91 = arith.mulf %87, %90 : vector<8x128xf32>
      %92 = arith.addf %82, %91 : vector<8x128xf32>
      %93 = arith.maximumf %83, %87 : vector<8x128xf32>
      %c7_i32 = arith.constant 7 : i32
      %c0_28 = arith.constant 0 : index
      %94 = arith.index_cast %c7_i32 : i32 to index
      %95 = arith.index_cast %23 : i32 to index
      %c0_29 = arith.constant 0 : index
      %96 = vector.load %arg5[%c0_28, %94, %95, %c0_29] : memref<1x8x8x128xf32, #tpu.memory_space<vmem>>, vector<1x1x8x128xf32>
      %97 = vector.shape_cast %96 : vector<1x1x8x128xf32> to vector<8x128xf32>
      %98 = arith.index_cast %c7_i32 : i32 to index
      %99 = memref.load %arg3[%98] : memref<8xf32, #tpu.memory_space<smem>>
      %100 = vector.broadcast %99 : f32 to vector<8x128xf32>
      %101 = arith.mulf %97, %100 : vector<8x128xf32>
      %102 = arith.addf %92, %101 : vector<8x128xf32>
      %103 = arith.maximumf %93, %97 : vector<8x128xf32>
      %c8_i32_30 = arith.constant 8 : i32
      %c8_i32_31 = arith.constant 8 : i32
      %104 = arith.muli %c0_i32_10, %c8_i32_31 : i32
      %105 = arith.addi %15, %104 : i32
      %106 = tpu.assume_multiple %105, 8 : i32
      %107 = arith.index_cast %106 : i32 to index
      %c0_32 = arith.constant 0 : index
      %108 = vector.load %arg7[%107, %c0_32] : memref<8x128xf32, #tpu.memory_space<vmem>>, vector<8x128xf32>
      tpu.vector_store %arg7[%107, %c0_32], %102 {strides = array<i32>} : memref<8x128xf32, #tpu.memory_space<vmem>>, vector<8x128xf32>,
      %109 = arith.index_cast %106 : i32 to index
      %c0_33 = arith.constant 0 : index
      %110 = vector.load %arg8[%109, %c0_33] : memref<8x128xf32, #tpu.memory_space<vmem>>, vector<8x128xf32>
      tpu.vector_store %arg8[%109, %c0_33], %103 {strides = array<i32>} : memref<8x128xf32, #tpu.memory_space<vmem>>, vector<8x128xf32>,
      %c8_i32_34 = arith.constant 8 : i32
      %111 = arith.muli %c0_i32_10, %c8_i32_34 : i32
      %112 = vector.broadcast %111 : i32 to vector<8x128xi32>
      %113 = arith.addi %21, %112 : vector<8x128xi32>
      %114 = vector.broadcast %18 : i32 to vector<8x128xi32>
      %115 = arith.cmpi slt, %113, %114 : vector<8x128xi32>
      %cst_35 = arith.constant 0.000000e+00 : f32
      %116 = vector.broadcast %cst_35 : f32 to vector<8x128xf32>
      %117 = arith.select %115, %102, %116 : vector<8x128xi1>, vector<8x128xf32>
      %118 = arith.addf %19, %117 : vector<8x128xf32>
      %119 = arith.mulf %117, %117 : vector<8x128xf32>
      %120 = arith.addf %19, %119 : vector<8x128xf32>
      %c1_i32_36 = arith.constant 1 : i32
      %c0_37 = arith.constant 0 : index
      %c0_38 = arith.constant 0 : index
      %121 = vector.load %arg9[%c0_37, %c0_38] : memref<8x128xf32, #tpu.memory_space<vmem>>, vector<8x128xf32>
      %122 = arith.addf %121, %118 : vector<8x128xf32>
      %c0_39 = arith.constant 0 : index
      %c0_40 = arith.constant 0 : index
      %123 = vector.load %arg9[%c0_39, %c0_40] : memref<8x128xf32, #tpu.memory_space<vmem>>, vector<8x128xf32>
      tpu.vector_store %arg9[%c0_39, %c0_40], %122 {strides = array<i32>} : memref<8x128xf32, #tpu.memory_space<vmem>>, vector<8x128xf32>,
      %c0_41 = arith.constant 0 : index
      %c0_42 = arith.constant 0 : index
      %124 = vector.load %arg10[%c0_41, %c0_42] : memref<8x128xf32, #tpu.memory_space<vmem>>, vector<8x128xf32>
      %125 = arith.addf %124, %120 : vector<8x128xf32>
      %c0_43 = arith.constant 0 : index
      %c0_44 = arith.constant 0 : index
      %126 = vector.load %arg10[%c0_43, %c0_44] : memref<8x128xf32, #tpu.memory_space<vmem>>, vector<8x128xf32>
      tpu.vector_store %arg10[%c0_43, %c0_44], %125 {strides = array<i32>} : memref<8x128xf32, #tpu.memory_space<vmem>>, vector<8x128xf32>,
    } else {
    }
    %c1_i32 = arith.constant 1 : i32
    %10 = arith.cmpi eq, %arg0, %c1_i32 : i32
    %11 = arith.extui %10 : i1 to i32
    %c0_i32_5 = arith.constant 0 : i32
    %12 = arith.cmpi ne, %11, %c0_i32_5 : i32
    scf.if %12 {
      %c0 = arith.constant 0 : index
      %c0_6 = arith.constant 0 : index
      %13 = vector.load %arg9[%c0, %c0_6] : memref<8x128xf32, #tpu.memory_space<vmem>>, vector<8x128xf32>
      %cst = arith.constant dense<0.000000e+00> : vector<8xf32>
      %14 = vector.multi_reduction <add>, %13, %cst [1] : vector<8x128xf32> to vector<8xf32>
      %15 = vector.shape_cast %14 : vector<8xf32> to vector<8x1xf32>
      %cst_7 = arith.constant dense<0.000000e+00> : vector<1xf32>
      %16 = vector.multi_reduction <add>, %15, %cst_7 [0] : vector<8x1xf32> to vector<1xf32>
      %17 = vector.shape_cast %16 : vector<1xf32> to vector<1x1xf32>
      %cst_8 = arith.constant 3.906250e-03 : f32
      %18 = vector.broadcast %cst_8 : f32 to vector<1x1xf32>
      %19 = arith.mulf %17, %18 : vector<1x1xf32>
      %c0_9 = arith.constant 0 : index
      %c0_10 = arith.constant 0 : index
      %20 = vector.load %arg10[%c0_9, %c0_10] : memref<8x128xf32, #tpu.memory_space<vmem>>, vector<8x128xf32>
      %cst_11 = arith.constant dense<0.000000e+00> : vector<8xf32>
      %21 = vector.multi_reduction <add>, %20, %cst_11 [1] : vector<8x128xf32> to vector<8xf32>
      %22 = vector.shape_cast %21 : vector<8xf32> to vector<8x1xf32>
      %cst_12 = arith.constant dense<0.000000e+00> : vector<1xf32>
      %23 = vector.multi_reduction <add>, %22, %cst_12 [0] : vector<8x1xf32> to vector<1xf32>
      %24 = vector.shape_cast %23 : vector<1xf32> to vector<1x1xf32>
      %cst_13 = arith.constant 3.906250e-03 : f32
      %25 = vector.broadcast %cst_13 : f32 to vector<1x1xf32>
      %26 = arith.mulf %24, %25 : vector<1x1xf32>
      %27 = arith.mulf %19, %19 : vector<1x1xf32>
      %28 = arith.subf %26, %27 : vector<1x1xf32>
      %cst_14 = arith.constant 0.000000e+00 : f32
      %29 = vector.broadcast %cst_14 : f32 to vector<1x1xf32>
      %30 = arith.maximumf %28, %29 : vector<1x1xf32>
      %c0_15 = arith.constant 0 : index
      %31 = memref.load %arg4[%c0_15] : memref<2xf32, #tpu.memory_space<smem>>
      %cst_16 = arith.constant 9.99999974E-6 : f32
      %32 = vector.broadcast %cst_16 : f32 to vector<1x1xf32>
      %33 = arith.addf %30, %32 : vector<1x1xf32>
      %34 = math.rsqrt %33 : vector<1x1xf32>
      %35 = vector.broadcast %31 : f32 to vector<1x1xf32>
      %36 = arith.mulf %35, %34 : vector<1x1xf32>
      %c1 = arith.constant 1 : index
      %37 = memref.load %arg4[%c1] : memref<2xf32, #tpu.memory_space<smem>>
      %38 = arith.mulf %19, %36 : vector<1x1xf32>
      %39 = vector.broadcast %37 : f32 to vector<1x1xf32>
      %40 = arith.subf %39, %38 : vector<1x1xf32>
      %c8_i32 = arith.constant 8 : i32
      %41 = arith.muli %arg1, %c8_i32 : i32
      %c8_i32_17 = arith.constant 8 : i32
      %42 = arith.muli %arg2, %c8_i32_17 : i32
      %43 = arith.addi %41, %42 : i32
      %44 = tpu.assume_multiple %43, 8 : i32
      %45 = arith.index_cast %44 : i32 to index
      %c0_18 = arith.constant 0 : index
      %46 = vector.load %arg7[%45, %c0_18] : memref<8x128xf32, #tpu.memory_space<vmem>>, vector<8x128xf32>
      %47 = arith.index_cast %44 : i32 to index
      %c0_19 = arith.constant 0 : index
      %48 = vector.load %arg8[%47, %c0_19] : memref<8x128xf32, #tpu.memory_space<vmem>>, vector<8x128xf32>
      %49 = vector.broadcast %36 : vector<1x1xf32> to vector<8x128xf32>
      %50 = arith.mulf %46, %49 : vector<8x128xf32>
      %51 = vector.broadcast %40 : vector<1x1xf32> to vector<8x128xf32>
      %52 = arith.addf %50, %51 : vector<8x128xf32>
      %53 = arith.addf %52, %48 : vector<8x128xf32>
      %c0_20 = arith.constant 0 : index
      %c0_21 = arith.constant 0 : index
      %c0_22 = arith.constant 0 : index
      %54 = vector.load %arg6[%c0_20, %c0_21, %c0_22] : memref<1x8x128xf32, #tpu.memory_space<vmem>>, vector<1x8x128xf32>
      %55 = vector.shape_cast %54 : vector<1x8x128xf32> to vector<8x128xf32>
      %56 = vector.shape_cast %53 : vector<8x128xf32> to vector<1x8x128xf32>
      tpu.vector_store %arg6[%c0_20, %c0_21, %c0_22], %56 {strides = array<i32>} : memref<1x8x128xf32, #tpu.memory_space<vmem>>, vector<1x8x128xf32>,
    } else {
    }
    return
  }
  func.func @transform_0(%arg0: i32, %arg1: i32, %arg2: i32) -> i32 {
    %c0_i32 = arith.constant 0 : i32
    %c0_i32_0 = arith.constant 0 : i32
    return %c0_i32 : i32
  }
  func.func @transform_1(%arg0: i32, %arg1: i32, %arg2: i32) -> i32 {
    %c0_i32 = arith.constant 0 : i32
    %c0_i32_0 = arith.constant 0 : i32
    return %c0_i32 : i32
  }
  func.func @transform_2(%arg0: i32, %arg1: i32, %arg2: i32) -> (i32, i32, i32, i32) {
    %c1_i32 = arith.constant 1 : i32
    %0 = arith.subi %c1_i32, %arg0 : i32
    %1 = arith.muli %arg1, %0 : i32
    %c0_i32 = arith.constant 0 : i32
    %2 = arith.muli %c0_i32, %arg0 : i32
    %3 = arith.addi %1, %2 : i32
    %c1_i32_0 = arith.constant 1 : i32
    %4 = arith.subi %c1_i32_0, %arg0 : i32
    %5 = arith.muli %arg2, %4 : i32
    %c0_i32_1 = arith.constant 0 : i32
    %6 = arith.muli %c0_i32_1, %arg0 : i32
    %7 = arith.addi %5, %6 : i32
    %c0_i32_2 = arith.constant 0 : i32
    %c0_i32_3 = arith.constant 0 : i32
    %c0_i32_4 = arith.constant 0 : i32
    return %3, %c0_i32_2, %7, %c0_i32_3 : i32, i32, i32, i32
  }
  func.func @transform_3(%arg0: i32, %arg1: i32, %arg2: i32) -> (i32, i32, i32) {
    %0 = arith.muli %arg1, %arg0 : i32
    %1 = arith.muli %arg2, %arg0 : i32
    %c0_i32 = arith.constant 0 : i32
    %c0_i32_0 = arith.constant 0 : i32
    return %0, %1, %c0_i32 : i32, i32, i32
  }
}

</mosaic_0001>

<llo_original>
// kernel: spatial_encoder.1
$region0: #{spatial_encoder.1}
  #allocation0 [shape = 'u32[]', space=smem, size = 0x4, offset = 0x4, fixed_abs, tag = 'smem constant byte address 0x4 - core index']
  #allocation1 [shape = 'u32[144,128]{1,0:T(1,128)}', space=vmem, size = 0x12000, scoped, tag = 'internal scratch']
  #allocation2 [shape = 'f32[8,128]{1,0:T(8,128)}', space=vmem, size = 0x1000, scoped, tag = 'scratch operand']
  #allocation3 [shape = 'f32[8,128]{1,0:T(8,128)}', space=vmem, size = 0x1000, scoped, tag = 'scratch operand']
  #allocation4 [shape = 'f32[8,128]{1,0:T(8,128)}', space=vmem, size = 0x1000, scoped, tag = 'scratch operand']
  #allocation5 [shape = 'f32[8,128]{1,0:T(8,128)}', space=vmem, size = 0x1000, scoped, tag = 'scratch operand']
  %s0 = inlined_call_operand.vmem [shape: f32[8], index: 0, kind: input, shape index: {}]
  %s1 = inlined_call_operand.vmem [shape: f32[2], index: 1, kind: input, shape index: {}]
  %s2 = inlined_call_operand.vmem [shape: f32[1,8,2,128], index: 2, kind: input, shape index: {}]
  %s3 = inlined_call_operand.vmem [shape: f32[1,8,128], index: 3, kind: output, shape index: {}]
  %s4 = sld [smem:[#allocation0]]
  $region106: #{spatial_encoder.1} parent=0
    _
  %s6 = ssub.s32 1, %s4
  %s7 = scalar_select 0, %s6, %s4
  $region1: #{spatial_encoder.1} parent=0
    #allocation6 [shape = 'u8[512]{0}', space=smem, size = 0x200, scoped, tag = 'input window, operand 0, single buffered']
    #allocation7 [shape = 's32[2]{0}', space=sflag, size = 0x8, scoped, tag = 'scoped memory for spatial_encoder.1']
    #allocation8 [shape = 'u8[512]{0}', space=smem, size = 0x200, scoped, tag = 'input window, operand 1, single buffered']
    #allocation9 [shape = 's32[1]{0}', space=sflag, size = 0x4, scoped, tag = 'scoped memory for spatial_encoder.1']
    #allocation10 [shape = 'u8[65536]{0}', space=vmem, size = 0x10000, scoped, tag = 'input window, operand 2']
    %8 = vsyncpa [#allocation7], 0
    %9 = vsyncpa [#allocation9], 0
    loop: start=0, step=1, limit=4
    $region2: #{spatial_encoder.1} parent=1 // loop_pre_header
      _
    $region3: #{spatial_encoder.1} parent=1 // loop_header
      %s11 = sphi 0, %s15
      %p12 = scmp.ge.s32.totalorder %s11, 4
      %s18 = sphi 0, %s37
      %s19 = sphi 0, %s33
      %s20 = sphi 0, %s29
      %s21 = sphi 0, %s18
      %s22 = sphi 0, %s19
      %s23 = sphi 0, %s20
      %s24 = sphi 0, %s21
      %s25 = sphi 0, %s22
      %s26 = sphi 0, %s23
      %s38 = sphi 0, %s38
      %s40 = sphi 0, %s38
      %s41 = sphi 0, %s40
      %s55 = sphi 0, %s41
      %s59 = sphi 0, %s59
      %s61 = sphi 0, %s59
      %s62 = sphi 0, %s61
      %s76 = sphi 0, %s62
      %s90 = sphi 0, %s92
      %s93 = sphi 0, %s90
      %s94 = sphi 0, %s93
      %s110 = sphi 0, %s94
      %s122 = sphi 0, %s124
      %s125 = sphi 0, %s122
      %s126 = sphi 0, %s125
      %s142 = sphi 0, %s126
    $region4: #{spatial_encoder.1} parent=1 // loop_header_branch
      %14 = sbr.rel (%p12) target = $region8
    $region5: #{spatial_encoder.1} parent=1 // loop_body
      %s16 = ssub.s32 %s11, 1
      %s17 = ssub.s32 %s11, 2
      %s27 = sadd.s32 1, %s20
      %p28 = scmp.ge.s32.totalorder %s27, 1
      %s29 = scalar_select %p28, 0, %s27
      %s30 = sadd.s32 1, %s19
      %s31 = scalar_select %p28, %s30, %s19
      %p32 = scmp.ge.s32.totalorder %s31, 1
      %s33 = scalar_select %p32, 0, %s31
      %s34 = sadd.s32 1, %s18
      %s35 = scalar_select %p32, %s34, %s18
      %p36 = scmp.ge.s32.totalorder %s35, 2
      %s37 = scalar_select %p36, 0, %s35
      %s39 = sadd.s32 %s38, 1
      %p42 = scmp.eq.s32.totalorder %s11, 1
      %p43 = scmp.ne.s32.totalorder %s38, %s40
      %p44 = scmp.eq.s32.totalorder %s11, 0
      %p45 = por %p43, %p44
      %p46 = scmp.ne.s32.totalorder %s38, %s40
      %p47 = scmp.eq.s32.totalorder %s16, 1
      %p48 = por %p46, %p47
      %p49 = scmp.ne.s32.totalorder %s40, %s41
      %p50 = scmp.eq.s32.totalorder %s16, 0
      %p51 = por %p49, %p50
      %p52 = scmp.ne.s32.totalorder %s40, %s41
      %p53 = scmp.eq.s32.totalorder %s17, 1
      %p54 = por %p52, %p53
      %p56 = scmp.ne.s32.totalorder %s41, %s55
      %p57 = scmp.eq.s32.totalorder %s17, 0
      %p58 = por %p56, %p57
      %s60 = sadd.s32 %s59, 1
      %p63 = scmp.eq.s32.totalorder %s11, 1
      %p64 = scmp.ne.s32.totalorder %s59, %s61
      %p65 = scmp.eq.s32.totalorder %s11, 0
      %p66 = por %p64, %p65
      %p67 = scmp.ne.s32.totalorder %s59, %s61
      %p68 = scmp.eq.s32.totalorder %s16, 1
      %p69 = por %p67, %p68
      %p70 = scmp.ne.s32.totalorder %s61, %s62
      %p71 = scmp.eq.s32.totalorder %s16, 0
      %p72 = por %p70, %p71
      %p73 = scmp.ne.s32.totalorder %s61, %s62
      %p74 = scmp.eq.s32.totalorder %s17, 1
      %p75 = por %p73, %p74
      %p77 = scmp.ne.s32.totalorder %s62, %s76
      %p78 = scmp.eq.s32.totalorder %s17, 0
      %p79 = por %p77, %p78
      %s80 = ssub.s32 1, %s18
      %s81 = smul.u32 %s19, %s80
      %s82 = smul.u32 %s20, %s80
      %s83 = ssub.s32 1, %s37
      %s84 = smul.u32 %s33, %s83
      %s85 = smul.u32 %s29, %s83
      %s86 = ssub.s32 %s81, %s84
      %s87 = ssub.s32 %s82, %s85
      %s88 = sor.u32 %s86, %s87
      %p89 = scmp.eq.s32.totalorder %s88, 0
      %s91 = sadd.s32 %s90, 1
      %s92 = scalar_select %p89, %s90, %s91
      %p95 = pneg %p89
      %p96 = scmp.eq.s32.totalorder %s11, 1
      %p97 = por %p95, %p96
      %p98 = scmp.ne.s32.totalorder %s90, %s93
      %p99 = scmp.eq.s32.totalorder %s11, 0
      %p100 = por %p98, %p99
      %p101 = scmp.ne.s32.totalorder %s90, %s93
      %p102 = scmp.eq.s32.totalorder %s16, 1
      %p103 = por %p101, %p102
      %p104 = scmp.ne.s32.totalorder %s93, %s94
      %p105 = scmp.eq.s32.totalorder %s16, 0
      %p106 = por %p104, %p105
      %p107 = scmp.ne.s32.totalorder %s93, %s94
      %p108 = scmp.eq.s32.totalorder %s17, 1
      %p109 = por %p107, %p108
      %p111 = scmp.ne.s32.totalorder %s94, %s110
      %p112 = scmp.eq.s32.totalorder %s17, 0
      %p113 = por %p111, %p112
      %s114 = smul.u32 %s19, %s18
      %s115 = smul.u32 %s20, %s18
      %s116 = smul.u32 %s33, %s37
      %s117 = smul.u32 %s29, %s37
      %s118 = ssub.s32 %s114, %s116
      %s119 = ssub.s32 %s115, %s117
      %s120 = sor.u32 %s118, %s119
      %p121 = scmp.eq.s32.totalorder %s120, 0
      %s123 = sadd.s32 %s122, 1
      %s124 = scalar_select %p121, %s122, %s123
      %p127 = pneg %p121
      %p128 = scmp.eq.s32.totalorder %s11, 1
      %p129 = por %p127, %p128
      %p130 = scmp.ne.s32.totalorder %s122, %s125
      %p131 = scmp.eq.s32.totalorder %s11, 0
      %p132 = por %p130, %p131
      %p133 = scmp.ne.s32.totalorder %s122, %s125
      %p134 = scmp.eq.s32.totalorder %s16, 1
      %p135 = por %p133, %p134
      %p136 = scmp.ne.s32.totalorder %s125, %s126
      %p137 = scmp.eq.s32.totalorder %s16, 0
      %p138 = por %p136, %p137
      %p139 = scmp.ne.s32.totalorder %s125, %s126
      %p140 = scmp.eq.s32.totalorder %s17, 1
      %p141 = por %p139, %p140
      %p143 = scmp.ne.s32.totalorder %s126, %s142
      %p144 = scmp.eq.s32.totalorder %s17, 0
      %p145 = por %p143, %p144
      %p146 = scmp.le.s32.totalorder 1, %s11
      %p147 = scmp.lt.s32.totalorder %s11, 3
      %p148 = pnand %p146, %p147
      %p149 = pneg %p148
      // Predicated region
      $region9: #{spatial_encoder.1} parent=5 // pred_check
        _
      $region10: #{spatial_encoder.1} parent=5 // pred_check_branch
        %151 = sbr.rel (%p148) target = $region12
      $region11: #{spatial_encoder.1} parent=5 // pred_region
        %s152 = ssub.s32 %s11, 1
        // Predicated region
        $region13: #{spatial_encoder.1} parent=11 // pred_check
          %p153 = pneg %p51
        $region14: #{spatial_encoder.1} parent=11 // pred_check_branch
          %155 = sbr.rel (%p153) target = $region16
        $region15: #{spatial_encoder.1} parent=11 // pred_region
          %s157 = ssub.s32 16, 16
          %158 = vsyncadd [#allocation7], %s157
          %s160 = sshll.u32 %s0, 4
          %s161 = int_to_ptr.vmem [resolvable:$true] %s160
          %163 = dma.vmem_to_smem %s161, 16, [#allocation6], [#allocation7]
        $region16: #{spatial_encoder.1} parent=11 // pred_fallthru
          _
        // Predicated region
        $region17: #{spatial_encoder.1} parent=11 // pred_check
          %p164 = pneg %p72
        $region18: #{spatial_encoder.1} parent=11 // pred_check_branch
          %166 = sbr.rel (%p164) target = $region20
        $region19: #{spatial_encoder.1} parent=11 // pred_region
          %s168 = ssub.s32 16, 16
          %169 = vsyncadd [#allocation9], %s168
          %s171 = sshll.u32 %s1, 4
          %s172 = int_to_ptr.vmem [resolvable:$true] %s171
          %174 = dma.vmem_to_smem %s172, 16, [#allocation8], [#allocation9]
        $region20: #{spatial_encoder.1} parent=11 // pred_fallthru
          _
      $region12: #{spatial_encoder.1} parent=5 // pred_fallthru
        _
      %p175 = scmp.lt.s32.totalorder %s11, 2
      // Predicated region
      $region21: #{spatial_encoder.1} parent=5 // pred_check
        %p176 = pneg %p175
      $region22: #{spatial_encoder.1} parent=5 // pred_check_branch
        %178 = sbr.rel (%p176) target = $region24
      $region23: #{spatial_encoder.1} parent=5 // pred_region
        // Predicated region
        $region25: #{spatial_encoder.1} parent=23 // pred_check
          %p179 = pneg %p100
        $region26: #{spatial_encoder.1} parent=23 // pred_check_branch
          %181 = sbr.rel (%p179) target = $region28
        $region27: #{spatial_encoder.1} parent=23 // pred_region
          %s182 = sand.u32 %s90, 1
          %s183 = sand.u32 %s90, 1
          %s184 = smul.addr %s183, 64
          %s185 = scalar_lea.vmem [#allocation10], %s184
          %s186 = ssub.s32 1, %s18
          %s187 = smul.u32 %s19, %s186
          %s188 = smul.u32 %s20, %s186
          %s189 = smul.u32 4, %s188
          %s190 = ssub.s32 1, %s189
          %s191 = smul.u32 256, %s190
          %p192 = scmp.ne.s32.totalorder 0, %s191
          %s193 = smul.addr %s187, 8
          %s194 = sadd.s32 %s189, %s193
          %s195 = smul.addr %s194, 2
          %s196 = scalar_lea.vmem %s2, %s195
          // Predicated region
          $region29: #{spatial_encoder.1} parent=27 // pred_check
            %p197 = pneg %p192
          $region30: #{spatial_encoder.1} parent=27 // pred_check_branch
            %199 = sbr.rel (%p197) target = $region32
          $region31: #{spatial_encoder.1} parent=27 // pred_region
            // Predicated region
            $region33: #{spatial_encoder.1} parent=31 // pred_check
              _
            $region34: #{spatial_encoder.1} parent=31 // pred_check_branch
              %201 = sbr.rel target = $region36
            $region35: #{spatial_encoder.1} parent=31 // pred_region
              // Predicated region
              $region48: #{spatial_encoder.1} parent=35 // pred_check
                _
              $region49: #{spatial_encoder.1} parent=35 // pred_check_branch
                %238 = sbr.rel (0) target = $region51
              $region50: #{spatial_encoder.1} parent=35 // pred_region
                // While loop
                $region52: #{spatial_encoder.1} parent=50 // loop_pre_header
                  _
                $region53: #{spatial_encoder.1} parent=50 // loop_header
                  %s240 = sphi 0, %s242
                  %p241 = scmp.ge.s32.totalorder %s240, %s190
                  %s245 = sphi 0, %s250
                  %s246 = sphi %s196, %s253
                  %s247 = sphi %s185, %s254
                $region54: #{spatial_encoder.1} parent=50 // loop_header_branch
                  %244 = sbr.rel (%p241) target = $region58
                $region55: #{spatial_encoder.1} parent=50 // loop_body
                  %s248 = sadd.s32 1, %s245
                  %p249 = scmp.ge.s32.totalorder %s248, %s190
                  %s250 = scalar_select %p249, 0, %s248
                  %s251 = smul.u32 %s250, 2
                  %s252 = smul.u32 %s250, 2
                  %s253 = scalar_lea.vmem %s196, %s251
                  %s254 = scalar_lea.vmem %s185, %s252 [#allocation10]
                $region56: #{spatial_encoder.1} parent=50 // loop_footer
                  %s242 = sadd.s32 %s240, 1
                $region57: #{spatial_encoder.1} parent=50 // loop_footer_branch
                  %239 = sbr.rel target = $region53
                $region58: #{spatial_encoder.1} parent=50 // loop_exit
                  _
                // While loop
                $region59: #{spatial_encoder.1} parent=50 // loop_pre_header
                  _
                $region60: #{spatial_encoder.1} parent=50 // loop_header
                  %s257 = sphi 0, %s259
                  %p258 = scmp.ge.s32.totalorder %s257, %s190
                  %s262 = sphi 0, %s283
                  %s263 = sphi %s196, %s286
                  %s264 = sphi %s185, %s287
                $region61: #{spatial_encoder.1} parent=50 // loop_header_branch
                  %261 = sbr.rel (%p258) target = $region65
                $region62: #{spatial_encoder.1} parent=50 // loop_body
                  %v265 = vld [vmem:[%s263] sm:$0x3]
                  %266 = vst [vmem:[%s264] sm:$0x3] %v265
                  %v267 = vld [vmem:[%s263 + $0x2] sm:$0x3]
                  %268 = vst [vmem:[%s264 + $0x8] sm:$0x3] %v267
                  %v269 = vld [vmem:[%s263 + $0x4] sm:$0x3]
                  %270 = vst [vmem:[%s264 + $0x10] sm:$0x3] %v269
                  %v271 = vld [vmem:[%s263 + $0x6] sm:$0x3]
                  %272 = vst [vmem:[%s264 + $0x18] sm:$0x3] %v271
                  %v273 = vld [vmem:[%s263 + $0x8] sm:$0x3]
                  %274 = vst [vmem:[%s264 + $0x20] sm:$0x3] %v273
                  %v275 = vld [vmem:[%s263 + $0xa] sm:$0x3]
                  %276 = vst [vmem:[%s264 + $0x28] sm:$0x3] %v275
                  %v277 = vld [vmem:[%s263 + $0xc] sm:$0x3]
                  %278 = vst [vmem:[%s264 + $0x30] sm:$0x3] %v277
                  %v279 = vld [vmem:[%s263 + $0xe] sm:$0x3]
                  %280 = vst [vmem:[%s264 + $0x38] sm:$0x3] %v279
                  %s281 = sadd.s32 1, %s262
                  %p282 = scmp.ge.s32.totalorder %s281, %s190
                  %s283 = scalar_select %p282, 0, %s281
                  %s284 = smul.u32 %s283, 2
                  %s285 = smul.u32 %s283, 2
                  %s286 = scalar_lea.vmem %s196, %s284
                  %s287 = scalar_lea.vmem %s185, %s285 [#allocation10]
                $region63: #{spatial_encoder.1} parent=50 // loop_footer
                  %s259 = sadd.s32 %s257, 1
                $region64: #{spatial_encoder.1} parent=50 // loop_footer_branch
                  %256 = sbr.rel target = $region60
                $region65: #{spatial_encoder.1} parent=50 // loop_exit
                  _
              $region51: #{spatial_encoder.1} parent=35 // pred_fallthru
                _
            $region36: #{spatial_encoder.1} parent=31 // pred_fallthru
              _
            // Predicated region
            $region37: #{spatial_encoder.1} parent=31 // pred_check
              _
            $region38: #{spatial_encoder.1} parent=31 // pred_check_branch
              %203 = sbr.rel (0) target = $region40
            $region39: #{spatial_encoder.1} parent=31 // pred_region
              // While loop
              $region41: #{spatial_encoder.1} parent=39 // loop_pre_header
                _
              $region42: #{spatial_encoder.1} parent=39 // loop_header
                %s206 = sphi 0, %s208
                %p207 = scmp.ge.s32.totalorder %s206, %s190
                %s211 = sphi 0, %s232
                %s212 = sphi %s196, %s235
                %s213 = sphi %s185, %s236
              $region43: #{spatial_encoder.1} parent=39 // loop_header_branch
                %210 = sbr.rel (%p207) target = $region47
              $region44: #{spatial_encoder.1} parent=39 // loop_body
                %v214 = vld [vmem:[%s212] sm:$0x3]
                %215 = vst [vmem:[%s213] sm:$0x3] %v214
                %v216 = vld [vmem:[%s212 + $0x2] sm:$0x3]
                %217 = vst [vmem:[%s213 + $0x8] sm:$0x3] %v216
                %v218 = vld [vmem:[%s212 + $0x4] sm:$0x3]
                %219 = vst [vmem:[%s213 + $0x10] sm:$0x3] %v218
                %v220 = vld [vmem:[%s212 + $0x6] sm:$0x3]
                %221 = vst [vmem:[%s213 + $0x18] sm:$0x3] %v220
                %v222 = vld [vmem:[%s212 + $0x8] sm:$0x3]
                %223 = vst [vmem:[%s213 + $0x20] sm:$0x3] %v222
                %v224 = vld [vmem:[%s212 + $0xa] sm:$0x3]
                %225 = vst [vmem:[%s213 + $0x28] sm:$0x3] %v224
                %v226 = vld [vmem:[%s212 + $0xc] sm:$0x3]
                %227 = vst [vmem:[%s213 + $0x30] sm:$0x3] %v226
                %v228 = vld [vmem:[%s212 + $0xe] sm:$0x3]
                %229 = vst [vmem:[%s213 + $0x38] sm:$0x3] %v228
                %s230 = sadd.s32 1, %s211
                %p231 = scmp.ge.s32.totalorder %s230, %s190
                %s232 = scalar_select %p231, 0, %s230
                %s233 = smul.u32 %s232, 2
                %s234 = smul.u32 %s232, 2
                %s235 = scalar_lea.vmem %s196, %s233
                %s236 = scalar_lea.vmem %s185, %s234 [#allocation10]
              $region45: #{spatial_encoder.1} parent=39 // loop_footer
                %s208 = sadd.s32 %s206, 1
              $region46: #{spatial_encoder.1} parent=39 // loop_footer_branch
                %205 = sbr.rel target = $region42
              $region47: #{spatial_encoder.1} parent=39 // loop_exit
                _
            $region40: #{spatial_encoder.1} parent=31 // pred_fallthru
              _
          $region32: #{spatial_encoder.1} parent=27 // pred_fallthru
            _
          %288 = vnop
        $region28: #{spatial_encoder.1} parent=23 // pred_fallthru
          _
      $region24: #{spatial_encoder.1} parent=5 // pred_fallthru
        _
      %p289 = scmp.le.s32.totalorder 1, %s11
      %p290 = scmp.lt.s32.totalorder %s11, 3
      %p291 = pnand %p289, %p290
      %p292 = pneg %p291
      // Predicated region
      $region66: #{spatial_encoder.1} parent=5 // pred_check
        _
      $region67: #{spatial_encoder.1} parent=5 // pred_check_branch
        %294 = sbr.rel (%p291) target = $region69
      $region68: #{spatial_encoder.1} parent=5 // pred_region
        %s295 = ssub.s32 %s11, 1
        // Predicated region
        $region70: #{spatial_encoder.1} parent=68 // pred_check
          %p296 = pneg %p51
        $region71: #{spatial_encoder.1} parent=68 // pred_check_branch
          %298 = sbr.rel (%p296) target = $region73
        $region72: #{spatial_encoder.1} parent=68 // pred_region
          %299 = dma.done [#allocation7], 16
        $region73: #{spatial_encoder.1} parent=68 // pred_fallthru
          _
        // Predicated region
        $region74: #{spatial_encoder.1} parent=68 // pred_check
          %p300 = pneg %p72
        $region75: #{spatial_encoder.1} parent=68 // pred_check_branch
          %302 = sbr.rel (%p300) target = $region77
        $region76: #{spatial_encoder.1} parent=68 // pred_region
          %303 = dma.done [#allocation9], 16
        $region77: #{spatial_encoder.1} parent=68 // pred_fallthru
          _
        %s304 = sand.u32 %s93, 1
        %s305 = sand.u32 %s93, 1
        %s306 = smul.addr %s305, 64
        %s307 = scalar_lea.vmem [#allocation10], %s306
        // Predicated region
        $region78: #{spatial_encoder.1} parent=68 // pred_check
          %p308 = pneg %p106
        $region79: #{spatial_encoder.1} parent=68 // pred_check_branch
          %310 = sbr.rel (%p308) target = $region81
        $region80: #{spatial_encoder.1} parent=68 // pred_region
          _
        $region81: #{spatial_encoder.1} parent=68 // pred_fallthru
          _
        %311 = sfence
        %p312 = pneg %p51
        %p313 = pneg %p48
        %p314 = pneg %p72
        %p315 = pneg %p69
        %s316 = sand.u32 %s93, 1
        %s317 = sand.u32 %s93, 1
        %s318 = smul.addr %s317, 64
        %s319 = scalar_lea.vmem [#allocation10], %s318
        %p320 = pneg %p106
        %p321 = pneg %p103
        %p322 = pneg %p138
        %p323 = pneg %p135
        %s324 = smul.u32 %s22, %s21
        %s325 = smul.u32 %s23, %s21
        %p326 = scmp.lt.s32.totalorder %s324, 0
        %s327 = scalar_select %p326, %s324, 0
        %p328 = scmp.lt.s32.totalorder %s325, 0
        %s329 = scalar_select %p328, %s325, 0
        %s330 = sadd.s32 %s329, %s327
        %s331 = smul.addr %s330, 8
        %s332 = scalar_lea.vmem %s3, %s331
        %s333 = ssub.s32 1, %s21
        %s334 = smul.u32 %s22, %s333
        %s335 = smul.u32 %s23, %s333
        %s336 = smul.u32 4, %s335
        %s337 = ssub.s32 1, %s336
        %s338 = smul.u32 256, %s337
        %s339 = smul.u32 %s22, %s21
        %s340 = smul.u32 %s23, %s21
        %p341 = scmp.lt.s32.totalorder %s339, 0
        %s342 = scalar_select %p341, %s339, 0
        %p343 = scmp.lt.s32.totalorder %s340, 0
        %s344 = scalar_select %p343, %s340, 0
        %s345 = sadd.s32 %s344, %s342
        %s346 = smul.addr %s345, 8
        %s347 = scalar_lea.vmem %s3, %s346
        %s348 = smul.u32 %s22, %s21
        %s349 = smul.u32 %s23, %s21
        %p350 = scmp.eq.s32.totalorder %s21, 0
        %p351 = scmp.eq.s32.totalorder %s22, 0
        %p352 = pnand %p350, %p351
        %p353 = pneg %p352
        %p354 = scmp.eq.s32.totalorder %s23, 0
        %p355 = pnand %p353, %p354
        %p356 = pneg %p355
        // Predicated region
        $region82: #{spatial_encoder.1} parent=68 // pred_check
          _
        $region83: #{spatial_encoder.1} parent=68 // pred_check_branch
          %358 = sbr.rel (%p355) target = $region85
        $region84: #{spatial_encoder.1} parent=68 // pred_region
          %359 = vst [vmem:[#allocation4] sm:$0xff] 0.0
          %360 = vst [vmem:[#allocation5] sm:$0xff] 0.0
        $region85: #{spatial_encoder.1} parent=68 // pred_fallthru
          _
        // Predicated region
        $region86: #{spatial_encoder.1} parent=68 // pred_check
          %p361 = pneg %p350
        $region87: #{spatial_encoder.1} parent=68 // pred_check_branch
          %363 = sbr.rel (%p361) target = $region89
        $region88: #{spatial_encoder.1} parent=68 // pred_region
          %s364 = smul.u32 %s22, 8
          %s365 = smul.u32 %s23, 8
          %s366 = sadd.s32 %s364, %s365
          %s367 = ssub.s32 2, %s365
          %p368 = scmp.lt.s32.totalorder %s367, 8
          %s369 = scalar_select %p368, %s367, 8
          %v370 = vlaneseq
          %v371 = vshrl.u32 %v370, 7
          %v372 = vld [vmem:[%s307] sm:$0xff]
          %s373 = sld [smem:[#allocation6]]
          %v374 = vstv %s373
          %v375 = vmul.f32 %v372, %v374
          %v376 = vadd.f32 %v375, 0.0
          %s377 = sadd.s32 0, 8
          %s378 = scalar_lea.vmem %s307, %s377 [#allocation10]
          %v379 = vld [vmem:[%s378] sm:$0xff]
          %s380 = sld [smem:[#allocation6 + $0x1]]
          %v381 = vstv %s380
          %v382 = vmul.f32 %v379, %v381
          %v383 = vadd.f32 %v376, %v382
          %v384 = vmax.f32 %v372, %v379
          %s385 = sadd.s32 0, 16
          %s386 = scalar_lea.vmem %s307, %s385 [#allocation10]
          %v387 = vld [vmem:[%s386] sm:$0xff]
          %s388 = sld [smem:[#allocation6 + $0x2]]
          %v389 = vstv %s388
          %v390 = vmul.f32 %v387, %v389
          %v391 = vadd.f32 %v383, %v390
          %v392 = vmax.f32 %v384, %v387
          %s393 = sadd.s32 0, 24
          %s394 = scalar_lea.vmem %s307, %s393 [#allocation10]
          %v395 = vld [vmem:[%s394] sm:$0xff]
          %s396 = sld [smem:[#allocation6 + $0x3]]
          %v397 = vstv %s396
          %v398 = vmul.f32 %v395, %v397
          %v399 = vadd.f32 %v391, %v398
          %v400 = vmax.f32 %v392, %v395
          %s401 = sadd.s32 0, 32
          %s402 = scalar_lea.vmem %s307, %s401 [#allocation10]
          %v403 = vld [vmem:[%s402] sm:$0xff]
          %s404 = sld [smem:[#allocation6 + $0x4]]
          %v405 = vstv %s404
          %v406 = vmul.f32 %v403, %v405
          %v407 = vadd.f32 %v399, %v406
          %v408 = vmax.f32 %v400, %v403
          %s409 = sadd.s32 0, 40
          %s410 = scalar_lea.vmem %s307, %s409 [#allocation10]
          %v411 = vld [vmem:[%s410] sm:$0xff]
          %s412 = sld [smem:[#allocation6 + $0x5]]
          %v413 = vstv %s412
          %v414 = vmul.f32 %v411, %v413
          %v415 = vadd.f32 %v407, %v414
          %v416 = vmax.f32 %v408, %v411
          %s417 = sadd.s32 0, 48
          %s418 = scalar_lea.vmem %s307, %s417 [#allocation10]
          %v419 = vld [vmem:[%s418] sm:$0xff]
          %s420 = sld [smem:[#allocation6 + $0x6]]
          %v421 = vstv %s420
          %v422 = vmul.f32 %v419, %v421
          %v423 = vadd.f32 %v415, %v422
          %v424 = vmax.f32 %v416, %v419
          %s425 = sadd.s32 0, 56
          %s426 = scalar_lea.vmem %s307, %s425 [#allocation10]
          %v427 = vld [vmem:[%s426] sm:$0xff]
          %s428 = sld [smem:[#allocation6 + $0x7]]
          %v429 = vstv %s428
          %v430 = vmul.f32 %v427, %v429
          %v431 = vadd.f32 %v423, %v430
          %v432 = vmax.f32 %v424, %v427
          %s433 = scalar_lea.vmem [#allocation2], %s366
          %434 = vst [vmem:[%s433] sm:$0xff] %v431
          %s435 = scalar_lea.vmem [#allocation3], %s366
          %436 = vst [vmem:[%s435] sm:$0xff] %v432
          %v437 = vstv %s369
          %vm438 = vcmp.lt.s32.totalorder %v371, %v437
          %v439 = vsel %vm438, %v431, 0.0
          %v440 = vadd.f32 %v439, 0.0
          %v441 = vmul.f32 %v439, %v439
          %v442 = vadd.f32 %v441, 0.0
          %v443 = vld [vmem:[#allocation4] sm:$0xff]
          %v444 = vadd.f32 %v443, %v440
          %445 = vst [vmem:[#allocation4] sm:$0xff] %v444
          %v446 = vld [vmem:[#allocation5] sm:$0xff]
          %v447 = vadd.f32 %v446, %v442
          %448 = vst [vmem:[#allocation5] sm:$0xff] %v447
        $region89: #{spatial_encoder.1} parent=68 // pred_fallthru
          _
        %p449 = scmp.eq.s32.totalorder %s21, 1
        // Predicated region
        $region90: #{spatial_encoder.1} parent=68 // pred_check
          %p450 = pneg %p449
        $region91: #{spatial_encoder.1} parent=68 // pred_check_branch
          %452 = sbr.rel (%p450) target = $region93
        $region92: #{spatial_encoder.1} parent=68 // pred_region
          %v453 = vld [vmem:[#allocation4] sm:$0xff]
          %454 = vadd.xlane.f32.xlu0 %v453
          %v455 = vpop.xlane.xlu0 %454
          %v456 = vrot.slane %v455, 4
          %v457 = vadd.f32 %v455, %v456
          %v458 = vrot.slane %v457, 2
          %v459 = vadd.f32 %v457, %v458
          %v460 = vrot.slane %v459, 1
          %v461 = vadd.f32 %v459, %v460
          %v462 = vmul.f32 %v461, 0.00390625
          %v463 = vld [vmem:[#allocation5] sm:$0xff]
          %464 = vadd.xlane.f32.xlu0 %v463
          %v465 = vpop.xlane.xlu0 %464
          %v466 = vrot.slane %v465, 4
          %v467 = vadd.f32 %v465, %v466
          %v468 = vrot.slane %v467, 2
          %v469 = vadd.f32 %v467, %v468
          %v470 = vrot.slane %v469, 1
          %v471 = vadd.f32 %v469, %v470
          %v472 = vmul.f32 %v471, 0.00390625
          %v473 = vmul.f32 %v462, %v462
          %v474 = vsub.f32 %v472, %v473
          %v475 = vmax.f32 %v474, 0.0
          %s476 = sld [smem:[#allocation8]]
          %v477 = vadd.f32 %v475, 1e-05
          %v478 = vrsqrt.pop %v477
          %v479 = vstv %s476
          %v480 = vmul.f32 %v479, %v478
          %s481 = sld [smem:[#allocation8 + $0x1]]
          %v482 = vmul.f32 %v462, %v480
          %v483 = vstv %s481
          %v484 = vsub.f32 %v483, %v482
          %s485 = smul.u32 %s22, 8
          %s486 = smul.u32 %s23, 8
          %s487 = sadd.s32 %s485, %s486
          %s488 = scalar_lea.vmem [#allocation2], %s487
          %v489 = vld [vmem:[%s488] sm:$0xff]
          %s490 = scalar_lea.vmem [#allocation3], %s487
          %v491 = vld [vmem:[%s490] sm:$0xff]
          %v492 = vmul.f32 %v489, %v480
          %v493 = vadd.f32 %v492, %v484
          %v494 = vadd.f32 %v493, %v491
          %495 = vst [vmem:[%s347] sm:$0xff] %v494
        $region93: #{spatial_encoder.1} parent=68 // pred_fallthru
          _
        %s496 = smul.u32 %s22, %s21
        %s497 = smul.u32 %s23, %s21
        %p498 = scmp.lt.s32.totalorder %s496, 0
        %s499 = scalar_select %p498, %s496, 0
        %p500 = scmp.lt.s32.totalorder %s497, 0
        %s501 = scalar_select %p500, %s497, 0
        %s502 = sadd.s32 %s501, %s499
        %s503 = smul.addr %s502, 8
        %s504 = scalar_lea.vmem %s3, %s503
        // Predicated region
        $region94: #{spatial_encoder.1} parent=68 // pred_check
          %p505 = pneg %p135
        $region95: #{spatial_encoder.1} parent=68 // pred_check_branch
          %507 = sbr.rel (%p505) target = $region97
        $region96: #{spatial_encoder.1} parent=68 // pred_region
          %s508 = smul.u32 %s22, %s21
          %s509 = smul.u32 %s23, %s21
        $region97: #{spatial_encoder.1} parent=68 // pred_fallthru
          _
      $region69: #{spatial_encoder.1} parent=5 // pred_fallthru
        _
      %p510 = scmp.le.s32.totalorder 2, %s11
      // Predicated region
      $region98: #{spatial_encoder.1} parent=5 // pred_check
        %p511 = pneg %p510
      $region99: #{spatial_encoder.1} parent=5 // pred_check_branch
        %513 = sbr.rel (%p511) target = $region101
      $region100: #{spatial_encoder.1} parent=5 // pred_region
        %s514 = ssub.s32 %s11, 2
        // Predicated region
        $region102: #{spatial_encoder.1} parent=100 // pred_check
          %p515 = pneg %p141
        $region103: #{spatial_encoder.1} parent=100 // pred_check_branch
          %517 = sbr.rel (%p515) target = $region105
        $region104: #{spatial_encoder.1} parent=100 // pred_region
          %s518 = smul.u32 %s25, %s24
          %s519 = smul.u32 %s26, %s24
          %p520 = scmp.lt.s32.totalorder %s518, 0
          %s521 = scalar_select %p520, %s518, 0
          %p522 = scmp.lt.s32.totalorder %s519, 0
          %s523 = scalar_select %p522, %s519, 0
          %s524 = sadd.s32 %s523, %s521
          %s525 = smul.addr %s524, 8
          %s526 = scalar_lea.vmem %s3, %s525
        $region105: #{spatial_encoder.1} parent=100 // pred_fallthru
          _
      $region101: #{spatial_encoder.1} parent=5 // pred_fallthru
        _
    $region6: #{spatial_encoder.1} parent=1 // loop_footer
      %s15 = sadd.s32 1, %s11
    $region7: #{spatial_encoder.1} parent=1 // loop_footer_branch
      %10 = sbr.rel target = $region3
    $region8: #{spatial_encoder.1} parent=1 // loop_exit
      _
    %527 = vsyncpa [#allocation7], 1
    %s528 = scalar_lea.sflag [#allocation7], 1
    %529 = vsyncpa %s528, 1
    %530 = vsyncpa [#allocation9], 1

</llo_original>
